<compile_context>
chip_gen: v7x
topology: tpu7x:2x2x1
jax: 0.10.0
libtpu: 0.0.40
codegen_flags: <defaults>
</compile_context>

<pallas_src>
import functools

import jax
import jax.numpy as jnp
from jax.experimental import pallas as pl
from jax.experimental.pallas import tpu as pltpu

LANE = 128           # vreg lane width
SUBLANE = 8          # f32 sublane tile
TILE_ROWS_MAX = 512  # rows of 128 lanes per grid step (~256 KiB per input tile,
                     # 5 inputs x double-buffer ≈ 2.6 MiB — safe on v7x's VMEM)
NUM_CORES = 2        # leading 'parallel' axis: both TCs on v7x, harmless on v5e/v6e


def _custom_loss_kernel(lower_ref, upper_ref, tgt_ref, prev_ref, sign_ref,
                        out_ref, acc_ref, *, inv_n):
    t = pl.program_id(1)                      # reduction axis (last, 'arbitrary')

    @pl.when(t == 0)
    def _():
        acc_ref[...] = jnp.zeros_like(acc_ref)

    lower = lower_ref[...]                    # (tile_rows, 128) f32
    upper = upper_ref[...]
    tgt = tgt_ref[...]
    prev = prev_ref[...]
    s = sign_ref[...]                         # {+1, -1, 0}

    # coverage: relu(target - upper) + relu(lower - target)
    cov = jnp.maximum(tgt - upper, 0.0) + jnp.maximum(lower - tgt, 0.0)
    # validity: relu(lower - upper)
    valid = jnp.maximum(lower - upper, 0.0)
    # direction: relu(s * (center - prev)) reproduces the per-sample branches
    center = (lower + upper) * 0.5
    direction = jnp.maximum(s * (center - prev), 0.0)

    # fuse the loss weights per element so one per-lane accumulator suffices;
    # sublane-only reduction per step, cross-lane XLU reduction deferred to epilogue.
    partial = 0.1 * cov + 10.0 * valid + 0.5 * direction
    acc_ref[...] += jnp.sum(partial, axis=0, keepdims=True)

    @pl.when(t == pl.num_programs(1) - 1)
    def _():
        total = jnp.sum(acc_ref[...]) * inv_n          # this core's scaled partial
        out_ref[...] = jnp.full(out_ref.shape, total, dtype=out_ref.dtype)


def custom_loss(pred, target, prev_pci, delta_time, pv_values,
                *, tile_rows_max=TILE_ROWS_MAX, num_cores=NUM_CORES):
    """pred: [N, 2] (col 0 = lower, col 1 = upper); others: [N] or [N, 1]."""
    n = pred.shape[0]
    pred = jnp.asarray(pred, jnp.float32)
    lower = pred[:, 0]
    upper = pred[:, 1]
    tgt = jnp.asarray(target, jnp.float32).reshape(-1)
    prev = jnp.asarray(prev_pci, jnp.float32).reshape(-1)
    dt = jnp.asarray(delta_time, jnp.float32).reshape(-1)
    pv = jnp.asarray(pv_values, jnp.float32).reshape(-1)

    # Fuse dt/pv branch logic into one narrow stream: +1 if (pv==0 & dt!=0),
    # -1 if (pv!=0 & dt!=0), 0 otherwise.
    sign = jnp.where(dt != 0.0, jnp.where(pv == 0.0, 1.0, -1.0), 0.0)
    sign = sign.astype(jnp.float32)

    # Lane-dense padded layout: (rows_total, 128), rows split as cores x tiles.
    rows_needed = pl.cdiv(n, LANE)
    rows_per_core = pl.cdiv(rows_needed, num_cores)
    rows_per_core = pl.cdiv(rows_per_core, SUBLANE) * SUBLANE     # (8,128)-friendly
    tile_rows = min(tile_rows_max, rows_per_core)                 # multiple of 8
    tiles_per_core = pl.cdiv(rows_per_core, tile_rows)
    rows_per_core = tiles_per_core * tile_rows
    rows_total = rows_per_core * num_cores
    n_pad = rows_total * LANE

    def to_slab(v):
        v = jnp.pad(v, (0, n_pad - v.shape[0]))       # zero pad -> 0 contribution
        return v.reshape(rows_total, LANE)

    slabs = [to_slab(v) for v in (lower, upper, tgt, prev, sign)]

    in_spec = pl.BlockSpec((tile_rows, LANE),
                           lambda c, t: (c * tiles_per_core + t, 0))
    out_spec = pl.BlockSpec((SUBLANE, LANE), lambda c, t: (c, 0))

    kernel = functools.partial(_custom_loss_kernel, inv_n=1.0 / float(n))

    cost = pl.CostEstimate(
        flops=12 * n_pad,
        transcendentals=0,
        bytes_accessed=5 * n_pad * 4 + num_cores * SUBLANE * LANE * 4,
    )

    out = pl.pallas_call(
        kernel,
        out_shape=jax.ShapeDtypeStruct((num_cores * SUBLANE, LANE), jnp.float32),
        grid_spec=pltpu.PrefetchScalarGridSpec(
            num_scalar_prefetch=0,
            grid=(num_cores, tiles_per_core),
            in_specs=[in_spec] * 5,
            out_specs=out_spec,
            scratch_shapes=[pltpu.VMEM((1, LANE), jnp.float32)],
        ),
        compiler_params=pltpu.CompilerParams(
            dimension_semantics=("parallel", "arbitrary")),
        cost_estimate=cost,
    )(*slabs)

    # Each core's tile is filled with its already-scaled partial loss; sum them.
    total = jnp.sum(out[::SUBLANE, 0])
    # PyTorch forward returns a shape-[1] tensor (direction_penalty broadcast).
    return total.reshape(1)


def _reference_loss(pred, target, prev_pci, delta_time, pv_values):
    n = pred.shape[0]
    lower = pred[:, 0:1]
    upper = pred[:, 1:2]
    tgt = target.reshape(n, 1)
    cov = jnp.maximum(tgt - upper, 0.0) + jnp.maximum(lower - tgt, 0.0)
    coverage_penalty = cov.mean()
    valid_penalty = jnp.maximum(lower - upper, 0.0).mean()
    center = (lower + upper) / 2.0
    prev = prev_pci.reshape(n, 1)
    dt = delta_time.reshape(n, 1)
    pv = pv_values.reshape(n, 1)
    per = jnp.where((pv == 0) & (dt != 0), jnp.maximum(center - prev, 0.0),
                    jnp.where((pv != 0) & (dt != 0),
                              jnp.maximum(prev - center, 0.0), 0.0))
    direction_penalty = per.sum()
    return 0.1 * coverage_penalty + 10.0 * valid_penalty + 0.5 * direction_penalty / n


if __name__ == "__main__":
    def make_inputs(key, n):
        k1, k2, k3, k4, k5, k6 = jax.random.split(key, 6)
        pred = jax.random.normal(k1, (n, 2), dtype=jnp.float32)
        target = jax.random.normal(k2, (n,), dtype=jnp.float32)
        prev_pci = jax.random.normal(k3, (n,), dtype=jnp.float32)
        # delta_time: mix of zeros and non-zeros to exercise all branches
        delta_time = jnp.where(jax.random.uniform(k4, (n,)) > 0.3,
                               jax.random.uniform(k5, (n,)) * 5.0, 0.0)
        # pv_values: binary 0/1
        pv_values = (jax.random.uniform(k6, (n,)) > 0.5).astype(jnp.float32)
        return pred, target, prev_pci, delta_time, pv_values

    key = jax.random.PRNGKey(0)
    # N=8: small case from the module; N=300: exercises padding + multi-row slabs.
    for n in (8, 300):
        inputs = make_inputs(jax.random.fold_in(key, n), n)
        loss = jax.block_until_ready(custom_loss(*inputs))
        ref = _reference_loss(*inputs)
        assert loss.shape == (1,)
        assert jnp.allclose(loss[0], ref, rtol=1e-5, atol=1e-5), (n, loss, ref)

    print("KERNEL_OK")
</pallas_src>

<mosaic_0001>
module attributes {stable_mosaic.version = 11 : i64} {
  func.func @_custom_loss_kernel(%arg0: i32, %arg1: i32, %arg2: memref<8x128xf32, #tpu.memory_space<vmem>>, %arg3: memref<8x128xf32, #tpu.memory_space<vmem>>, %arg4: memref<8x128xf32, #tpu.memory_space<vmem>>, %arg5: memref<8x128xf32, #tpu.memory_space<vmem>>, %arg6: memref<8x128xf32, #tpu.memory_space<vmem>>, %arg7: memref<8x128xf32, #tpu.memory_space<vmem>>, %arg8: memref<1x128xf32, #tpu.memory_space<vmem>>) attributes {dimension_semantics = [#tpu.dimension_semantics<parallel>, #tpu.dimension_semantics<arbitrary>], iteration_bounds = array<i64: 2, 1>, scalar_prefetch = 0 : i64, scratch_operands = 1 : i64, tpu.core_type = #tpu.core_type<tc>, window_params = [{transform_indices = @transform_0, window_bounds = array<i64: 8, 128>}, {transform_indices = @transform_1, window_bounds = array<i64: 8, 128>}, {transform_indices = @transform_2, window_bounds = array<i64: 8, 128>}, {transform_indices = @transform_3, window_bounds = array<i64: 8, 128>}, {transform_indices = @transform_4, window_bounds = array<i64: 8, 128>}, {transform_indices = @transform_5, window_bounds = array<i64: 8, 128>}]} {
    %c0_i32 = arith.constant 0 : i32
    %0 = arith.cmpi eq, %arg1, %c0_i32 : i32
    %1 = arith.extui %0 : i1 to i32
    %c0_i32_0 = arith.constant 0 : i32
    %2 = arith.cmpi ne, %1, %c0_i32_0 : i32
    scf.if %2 {
      %cst_24 = arith.constant 0.000000e+00 : f32
      %41 = vector.broadcast %cst_24 : f32 to vector<1x128xf32>
      %c0_25 = arith.constant 0 : index
      %c0_26 = arith.constant 0 : index
      %42 = vector.load %arg8[%c0_25, %c0_26] : memref<1x128xf32, #tpu.memory_space<vmem>>, vector<1x128xf32>
      tpu.vector_store %arg8[%c0_25, %c0_26], %41 {strides = array<i32>} : memref<1x128xf32, #tpu.memory_space<vmem>>, vector<1x128xf32>,
    } else {
    }
    %c0 = arith.constant 0 : index
    %c0_1 = arith.constant 0 : index
    %3 = vector.load %arg2[%c0, %c0_1] : memref<8x128xf32, #tpu.memory_space<vmem>>, vector<8x128xf32>
    %c0_2 = arith.constant 0 : index
    %c0_3 = arith.constant 0 : index
    %4 = vector.load %arg3[%c0_2, %c0_3] : memref<8x128xf32, #tpu.memory_space<vmem>>, vector<8x128xf32>
    %c0_4 = arith.constant 0 : index
    %c0_5 = arith.constant 0 : index
    %5 = vector.load %arg4[%c0_4, %c0_5] : memref<8x128xf32, #tpu.memory_space<vmem>>, vector<8x128xf32>
    %c0_6 = arith.constant 0 : index
    %c0_7 = arith.constant 0 : index
    %6 = vector.load %arg5[%c0_6, %c0_7] : memref<8x128xf32, #tpu.memory_space<vmem>>, vector<8x128xf32>
    %c0_8 = arith.constant 0 : index
    %c0_9 = arith.constant 0 : index
    %7 = vector.load %arg6[%c0_8, %c0_9] : memref<8x128xf32, #tpu.memory_space<vmem>>, vector<8x128xf32>
    %8 = arith.subf %5, %4 : vector<8x128xf32>
    %cst = arith.constant 0.000000e+00 : f32
    %9 = vector.broadcast %cst : f32 to vector<8x128xf32>
    %10 = arith.maximumf %8, %9 : vector<8x128xf32>
    %11 = arith.subf %3, %5 : vector<8x128xf32>
    %cst_10 = arith.constant 0.000000e+00 : f32
    %12 = vector.broadcast %cst_10 : f32 to vector<8x128xf32>
    %13 = arith.maximumf %11, %12 : vector<8x128xf32>
    %14 = arith.addf %10, %13 : vector<8x128xf32>
    %15 = arith.subf %3, %4 : vector<8x128xf32>
    %cst_11 = arith.constant 0.000000e+00 : f32
    %16 = vector.broadcast %cst_11 : f32 to vector<8x128xf32>
    %17 = arith.maximumf %15, %16 : vector<8x128xf32>
    %18 = arith.addf %3, %4 : vector<8x128xf32>
    %cst_12 = arith.constant 5.000000e-01 : f32
    %19 = vector.broadcast %cst_12 : f32 to vector<8x128xf32>
    %20 = arith.mulf %18, %19 : vector<8x128xf32>
    %21 = arith.subf %20, %6 : vector<8x128xf32>
    %22 = arith.mulf %7, %21 : vector<8x128xf32>
    %cst_13 = arith.constant 0.000000e+00 : f32
    %23 = vector.broadcast %cst_13 : f32 to vector<8x128xf32>
    %24 = arith.maximumf %22, %23 : vector<8x128xf32>
    %cst_14 = arith.constant 1.000000e-01 : f32
    %25 = vector.broadcast %cst_14 : f32 to vector<8x128xf32>
    %26 = arith.mulf %25, %14 : vector<8x128xf32>
    %cst_15 = arith.constant 1.000000e+01 : f32
    %27 = vector.broadcast %cst_15 : f32 to vector<8x128xf32>
    %28 = arith.mulf %27, %17 : vector<8x128xf32>
    %29 = arith.addf %26, %28 : vector<8x128xf32>
    %cst_16 = arith.constant 5.000000e-01 : f32
    %30 = vector.broadcast %cst_16 : f32 to vector<8x128xf32>
    %31 = arith.mulf %30, %24 : vector<8x128xf32>
    %32 = arith.addf %29, %31 : vector<8x128xf32>
    %c0_17 = arith.constant 0 : index
    %c0_18 = arith.constant 0 : index
    %33 = vector.load %arg8[%c0_17, %c0_18] : memref<1x128xf32, #tpu.memory_space<vmem>>, vector<1x128xf32>
    %cst_19 = arith.constant dense<0.000000e+00> : vector<128xf32>
    %34 = vector.multi_reduction <add>, %32, %cst_19 [0] : vector<8x128xf32> to vector<128xf32>
    %35 = vector.shape_cast %34 : vector<128xf32> to vector<1x128xf32>
    %36 = arith.addf %33, %35 : vector<1x128xf32>
    %c0_20 = arith.constant 0 : index
    %c0_21 = arith.constant 0 : index
    %37 = vector.load %arg8[%c0_20, %c0_21] : memref<1x128xf32, #tpu.memory_space<vmem>>, vector<1x128xf32>
    tpu.vector_store %arg8[%c0_20, %c0_21], %36 {strides = array<i32>} : memref<1x128xf32, #tpu.memory_space<vmem>>, vector<1x128xf32>,
    %c0_i32_22 = arith.constant 0 : i32
    %38 = arith.cmpi eq, %arg1, %c0_i32_22 : i32
    %39 = arith.extui %38 : i1 to i32
    %c0_i32_23 = arith.constant 0 : i32
    %40 = arith.cmpi ne, %39, %c0_i32_23 : i32
    scf.if %40 {
      %c0_24 = arith.constant 0 : index
      %c0_25 = arith.constant 0 : index
      %41 = vector.load %arg8[%c0_24, %c0_25] : memref<1x128xf32, #tpu.memory_space<vmem>>, vector<1x128xf32>
      %42 = vector.shape_cast %41 : vector<1x128xf32> to vector<1x1x128xf32>
      %cst_26 = arith.constant dense<0.000000e+00> : vector<1xf32>
      %43 = vector.multi_reduction <add>, %42, %cst_26 [1, 2] : vector<1x1x128xf32> to vector<1xf32>
      %44 = vector.shape_cast %43 : vector<1xf32> to vector<1x1x1xf32>
      %45 = vector.extract %44[0, 0, 0] : f32 from vector<1x1x1xf32>
      %cst_27 = arith.constant 1.250000e-01 : f32
      %46 = arith.mulf %45, %cst_27 : f32
      %47 = vector.broadcast %46 : f32 to vector<8x128xf32>
      %c0_28 = arith.constant 0 : index
      %c0_29 = arith.constant 0 : index
      %48 = vector.load %arg7[%c0_28, %c0_29] : memref<8x128xf32, #tpu.memory_space<vmem>>, vector<8x128xf32>
      tpu.vector_store %arg7[%c0_28, %c0_29], %47 {strides = array<i32>} : memref<8x128xf32, #tpu.memory_space<vmem>>, vector<8x128xf32>,
    } else {
    }
    return
  }
  func.func @transform_0(%arg0: i32, %arg1: i32) -> (i32, i32) {
    %c1_i32 = arith.constant 1 : i32
    %0 = arith.muli %arg0, %c1_i32 : i32
    %1 = arith.addi %0, %arg1 : i32
    %c0_i32 = arith.constant 0 : i32
    %c0_i32_0 = arith.constant 0 : i32
    return %1, %c0_i32 : i32, i32
  }
  func.func @transform_1(%arg0: i32, %arg1: i32) -> (i32, i32) {
    %c1_i32 = arith.constant 1 : i32
    %0 = arith.muli %arg0, %c1_i32 : i32
    %1 = arith.addi %0, %arg1 : i32
    %c0_i32 = arith.constant 0 : i32
    %c0_i32_0 = arith.constant 0 : i32
    return %1, %c0_i32 : i32, i32
  }
  func.func @transform_2(%arg0: i32, %arg1: i32) -> (i32, i32) {
    %c1_i32 = arith.constant 1 : i32
    %0 = arith.muli %arg0, %c1_i32 : i32
    %1 = arith.addi %0, %arg1 : i32
    %c0_i32 = arith.constant 0 : i32
    %c0_i32_0 = arith.constant 0 : i32
    return %1, %c0_i32 : i32, i32
  }
  func.func @transform_3(%arg0: i32, %arg1: i32) -> (i32, i32) {
    %c1_i32 = arith.constant 1 : i32
    %0 = arith.muli %arg0, %c1_i32 : i32
    %1 = arith.addi %0, %arg1 : i32
    %c0_i32 = arith.constant 0 : i32
    %c0_i32_0 = arith.constant 0 : i32
    return %1, %c0_i32 : i32, i32
  }
  func.func @transform_4(%arg0: i32, %arg1: i32) -> (i32, i32) {
    %c1_i32 = arith.constant 1 : i32
    %0 = arith.muli %arg0, %c1_i32 : i32
    %1 = arith.addi %0, %arg1 : i32
    %c0_i32 = arith.constant 0 : i32
    %c0_i32_0 = arith.constant 0 : i32
    return %1, %c0_i32 : i32, i32
  }
  func.func @transform_5(%arg0: i32, %arg1: i32) -> (i32, i32) {
    %c0_i32 = arith.constant 0 : i32
    %c0_i32_0 = arith.constant 0 : i32
    return %arg0, %c0_i32 : i32, i32
  }
}

</mosaic_0001>

<llo_original>
// kernel: tpu_custom_call.1
$region0: #{tpu_custom_call.1}
  #allocation0 [shape = 'u32[]', space=smem, size = 0x4, offset = 0x4, fixed_abs, tag = 'smem constant byte address 0x4 - core index']
  #allocation1 [shape = 'u32[144,128]{1,0:T(1,128)}', space=vmem, size = 0x12000, scoped, tag = 'internal scratch']
  #allocation2 [shape = 'f32[1,128]{1,0:T(1,128)}', space=vmem, size = 0x200, scoped, tag = 'scratch operand']
  %s0 = inlined_call_operand.hbm [shape: f32[16,128], index: 0, kind: input, shape index: {}]
  %s1 = inlined_call_operand.hbm [shape: f32[16,128], index: 1, kind: input, shape index: {}]
  %s2 = inlined_call_operand.hbm [shape: f32[16,128], index: 2, kind: input, shape index: {}]
  %s3 = inlined_call_operand.hbm [shape: f32[16,128], index: 3, kind: input, shape index: {}]
  %s4 = inlined_call_operand.hbm [shape: f32[16,128], index: 4, kind: input, shape index: {}]
  %s5 = inlined_call_operand.hbm [shape: f32[16,128], index: 5, kind: output, shape index: {}]
  %s6 = sld [smem:[#allocation0]]
  $region81: #{tpu_custom_call.1} parent=0
    _
  %s8 = ssub.s32 1, %s6
  %s9 = scalar_select 0, %s8, %s6
  $region1: #{tpu_custom_call.1} parent=0
    #allocation3 [shape = 'u8[8192]{0}', space=vmem, size = 0x2000, scoped, tag = 'input window, operand 0']
    #allocation4 [shape = 's32[2]{0}', space=sflag, size = 0x8, scoped, tag = 'scoped memory for tpu_custom_call.1']
    #allocation5 [shape = 's32[2]{0}', space=sflag, size = 0x8, scoped, tag = 'scoped memory for tpu_custom_call.1']
    #allocation6 [shape = 'u8[8192]{0}', space=vmem, size = 0x2000, scoped, tag = 'input window, operand 1']
    #allocation7 [shape = 's32[2]{0}', space=sflag, size = 0x8, scoped, tag = 'scoped memory for tpu_custom_call.1']
    #allocation8 [shape = 'u8[8192]{0}', space=vmem, size = 0x2000, scoped, tag = 'input window, operand 2']
    #allocation9 [shape = 'u8[8192]{0}', space=vmem, size = 0x2000, scoped, tag = 'input window, operand 3']
    #allocation10 [shape = 's32[2]{0}', space=sflag, size = 0x8, scoped, tag = 'scoped memory for tpu_custom_call.1']
    #allocation11 [shape = 'u8[8192]{0}', space=vmem, size = 0x2000, scoped, tag = 'input window, operand 4']
    #allocation12 [shape = 'u8[8192]{0}', space=vmem, size = 0x2000, scoped, tag = 'output window, operand 0']
    %10 = vsyncpa [#allocation4], 0
    %s11 = scalar_lea.sflag [#allocation4], 1
    %12 = vsyncpa %s11, 0
    %13 = vsyncpa [#allocation7], 0
    %s14 = scalar_lea.sflag [#allocation7], 1
    %15 = vsyncpa %s14, 0
    %16 = vsyncpa [#allocation10], 0
    %s17 = scalar_lea.sflag [#allocation10], 1
    %18 = vsyncpa %s17, 0
    %19 = vsyncpa [#allocation5], 0
    %s20 = scalar_lea.sflag [#allocation5], 1
    %21 = vsyncpa %s20, 0
    loop: start=0, step=1, limit=4
    $region2: #{tpu_custom_call.1} parent=1 // loop_pre_header
      _
    $region3: #{tpu_custom_call.1} parent=1 // loop_header
      %s23 = sphi 0, %s27
      %p24 = scmp.ge.s32.totalorder %s23, 4
      %s30 = sphi 0, %s42
      %s31 = sphi 0, %s38
      %s32 = sphi 0, %s30
      %s33 = sphi 0, %s31
      %s34 = sphi 0, %s32
      %s35 = sphi 0, %s33
      %s47 = sphi 0, %s49
      %s50 = sphi 0, %s47
      %s51 = sphi 0, %s50
      %s67 = sphi 0, %s51
      %s75 = sphi 0, %s77
      %s78 = sphi 0, %s75
      %s79 = sphi 0, %s78
      %s95 = sphi 0, %s79
      %s103 = sphi 0, %s105
      %s106 = sphi 0, %s103
      %s107 = sphi 0, %s106
      %s123 = sphi 0, %s107
      %s131 = sphi 0, %s133
      %s134 = sphi 0, %s131
      %s135 = sphi 0, %s134
      %s151 = sphi 0, %s135
      %s159 = sphi 0, %s161
      %s162 = sphi 0, %s159
      %s163 = sphi 0, %s162
      %s179 = sphi 0, %s163
      %s185 = sphi 0, %s187
      %s188 = sphi 0, %s185
      %s189 = sphi 0, %s188
      %s205 = sphi 0, %s189
    $region4: #{tpu_custom_call.1} parent=1 // loop_header_branch
      %26 = sbr.rel (%p24) target = $region8
    $region5: #{tpu_custom_call.1} parent=1 // loop_body
      %s28 = ssub.s32 %s23, 1
      %s29 = ssub.s32 %s23, 2
      %s36 = sadd.s32 1, %s31
      %p37 = scmp.ge.s32.totalorder %s36, 1
      %s38 = scalar_select %p37, 0, %s36
      %s39 = sadd.s32 1, %s30
      %s40 = scalar_select %p37, %s39, %s30
      %p41 = scmp.ge.s32.totalorder %s40, 2
      %s42 = scalar_select %p41, 0, %s40
      %s43 = sadd.s32 %s30, %s31
      %s44 = sadd.s32 %s42, %s38
      %s45 = ssub.s32 %s43, %s44
      %p46 = scmp.eq.s32.totalorder %s45, 0
      %s48 = sadd.s32 %s47, 1
      %s49 = scalar_select %p46, %s47, %s48
      %p52 = pneg %p46
      %p53 = scmp.eq.s32.totalorder %s23, 1
      %p54 = por %p52, %p53
      %p55 = scmp.ne.s32.totalorder %s47, %s50
      %p56 = scmp.eq.s32.totalorder %s23, 0
      %p57 = por %p55, %p56
      %p58 = scmp.ne.s32.totalorder %s47, %s50
      %p59 = scmp.eq.s32.totalorder %s28, 1
      %p60 = por %p58, %p59
      %p61 = scmp.ne.s32.totalorder %s50, %s51
      %p62 = scmp.eq.s32.totalorder %s28, 0
      %p63 = por %p61, %p62
      %p64 = scmp.ne.s32.totalorder %s50, %s51
      %p65 = scmp.eq.s32.totalorder %s29, 1
      %p66 = por %p64, %p65
      %p68 = scmp.ne.s32.totalorder %s51, %s67
      %p69 = scmp.eq.s32.totalorder %s29, 0
      %p70 = por %p68, %p69
      %s71 = sadd.s32 %s30, %s31
      %s72 = sadd.s32 %s42, %s38
      %s73 = ssub.s32 %s71, %s72
      %p74 = scmp.eq.s32.totalorder %s73, 0
      %s76 = sadd.s32 %s75, 1
      %s77 = scalar_select %p74, %s75, %s76
      %p80 = pneg %p74
      %p81 = scmp.eq.s32.totalorder %s23, 1
      %p82 = por %p80, %p81
      %p83 = scmp.ne.s32.totalorder %s75, %s78
      %p84 = scmp.eq.s32.totalorder %s23, 0
      %p85 = por %p83, %p84
      %p86 = scmp.ne.s32.totalorder %s75, %s78
      %p87 = scmp.eq.s32.totalorder %s28, 1
      %p88 = por %p86, %p87
      %p89 = scmp.ne.s32.totalorder %s78, %s79
      %p90 = scmp.eq.s32.totalorder %s28, 0
      %p91 = por %p89, %p90
      %p92 = scmp.ne.s32.totalorder %s78, %s79
      %p93 = scmp.eq.s32.totalorder %s29, 1
      %p94 = por %p92, %p93
      %p96 = scmp.ne.s32.totalorder %s79, %s95
      %p97 = scmp.eq.s32.totalorder %s29, 0
      %p98 = por %p96, %p97
      %s99 = sadd.s32 %s30, %s31
      %s100 = sadd.s32 %s42, %s38
      %s101 = ssub.s32 %s99, %s100
      %p102 = scmp.eq.s32.totalorder %s101, 0
      %s104 = sadd.s32 %s103, 1
      %s105 = scalar_select %p102, %s103, %s104
      %p108 = pneg %p102
      %p109 = scmp.eq.s32.totalorder %s23, 1
      %p110 = por %p108, %p109
      %p111 = scmp.ne.s32.totalorder %s103, %s106
      %p112 = scmp.eq.s32.totalorder %s23, 0
      %p113 = por %p111, %p112
      %p114 = scmp.ne.s32.totalorder %s103, %s106
      %p115 = scmp.eq.s32.totalorder %s28, 1
      %p116 = por %p114, %p115
      %p117 = scmp.ne.s32.totalorder %s106, %s107
      %p118 = scmp.eq.s32.totalorder %s28, 0
      %p119 = por %p117, %p118
      %p120 = scmp.ne.s32.totalorder %s106, %s107
      %p121 = scmp.eq.s32.totalorder %s29, 1
      %p122 = por %p120, %p121
      %p124 = scmp.ne.s32.totalorder %s107, %s123
      %p125 = scmp.eq.s32.totalorder %s29, 0
      %p126 = por %p124, %p125
      %s127 = sadd.s32 %s30, %s31
      %s128 = sadd.s32 %s42, %s38
      %s129 = ssub.s32 %s127, %s128
      %p130 = scmp.eq.s32.totalorder %s129, 0
      %s132 = sadd.s32 %s131, 1
      %s133 = scalar_select %p130, %s131, %s132
      %p136 = pneg %p130
      %p137 = scmp.eq.s32.totalorder %s23, 1
      %p138 = por %p136, %p137
      %p139 = scmp.ne.s32.totalorder %s131, %s134
      %p140 = scmp.eq.s32.totalorder %s23, 0
      %p141 = por %p139, %p140
      %p142 = scmp.ne.s32.totalorder %s131, %s134
      %p143 = scmp.eq.s32.totalorder %s28, 1
      %p144 = por %p142, %p143
      %p145 = scmp.ne.s32.totalorder %s134, %s135
      %p146 = scmp.eq.s32.totalorder %s28, 0
      %p147 = por %p145, %p146
      %p148 = scmp.ne.s32.totalorder %s134, %s135
      %p149 = scmp.eq.s32.totalorder %s29, 1
      %p150 = por %p148, %p149
      %p152 = scmp.ne.s32.totalorder %s135, %s151
      %p153 = scmp.eq.s32.totalorder %s29, 0
      %p154 = por %p152, %p153
      %s155 = sadd.s32 %s30, %s31
      %s156 = sadd.s32 %s42, %s38
      %s157 = ssub.s32 %s155, %s156
      %p158 = scmp.eq.s32.totalorder %s157, 0
      %s160 = sadd.s32 %s159, 1
      %s161 = scalar_select %p158, %s159, %s160
      %p164 = pneg %p158
      %p165 = scmp.eq.s32.totalorder %s23, 1
      %p166 = por %p164, %p165
      %p167 = scmp.ne.s32.totalorder %s159, %s162
      %p168 = scmp.eq.s32.totalorder %s23, 0
      %p169 = por %p167, %p168
      %p170 = scmp.ne.s32.totalorder %s159, %s162
      %p171 = scmp.eq.s32.totalorder %s28, 1
      %p172 = por %p170, %p171
      %p173 = scmp.ne.s32.totalorder %s162, %s163
      %p174 = scmp.eq.s32.totalorder %s28, 0
      %p175 = por %p173, %p174
      %p176 = scmp.ne.s32.totalorder %s162, %s163
      %p177 = scmp.eq.s32.totalorder %s29, 1
      %p178 = por %p176, %p177
      %p180 = scmp.ne.s32.totalorder %s163, %s179
      %p181 = scmp.eq.s32.totalorder %s29, 0
      %p182 = por %p180, %p181
      %s183 = ssub.s32 %s30, %s42
      %p184 = scmp.eq.s32.totalorder %s183, 0
      %s186 = sadd.s32 %s185, 1
      %s187 = scalar_select %p184, %s185, %s186
      %p190 = pneg %p184
      %p191 = scmp.eq.s32.totalorder %s23, 1
      %p192 = por %p190, %p191
      %p193 = scmp.ne.s32.totalorder %s185, %s188
      %p194 = scmp.eq.s32.totalorder %s23, 0
      %p195 = por %p193, %p194
      %p196 = scmp.ne.s32.totalorder %s185, %s188
      %p197 = scmp.eq.s32.totalorder %s28, 1
      %p198 = por %p196, %p197
      %p199 = scmp.ne.s32.totalorder %s188, %s189
      %p200 = scmp.eq.s32.totalorder %s28, 0
      %p201 = por %p199, %p200
      %p202 = scmp.ne.s32.totalorder %s188, %s189
      %p203 = scmp.eq.s32.totalorder %s29, 1
      %p204 = por %p202, %p203
      %p206 = scmp.ne.s32.totalorder %s189, %s205
      %p207 = scmp.eq.s32.totalorder %s29, 0
      %p208 = por %p206, %p207
      %p209 = scmp.le.s32.totalorder 1, %s23
      %p210 = scmp.lt.s32.totalorder %s23, 3
      %p211 = pnand %p209, %p210
      %p212 = pneg %p211
      // Predicated region
      $region9: #{tpu_custom_call.1} parent=5 // pred_check
        _
      $region10: #{tpu_custom_call.1} parent=5 // pred_check_branch
        %214 = sbr.rel (%p211) target = $region12
      $region11: #{tpu_custom_call.1} parent=5 // pred_region
        %s215 = ssub.s32 %s23, 1
      $region12: #{tpu_custom_call.1} parent=5 // pred_fallthru
        _
      %p216 = scmp.lt.s32.totalorder %s23, 2
      // Predicated region
      $region13: #{tpu_custom_call.1} parent=5 // pred_check
        %p217 = pneg %p216
      $region14: #{tpu_custom_call.1} parent=5 // pred_check_branch
        %219 = sbr.rel (%p217) target = $region16
      $region15: #{tpu_custom_call.1} parent=5 // pred_region
        // Predicated region
        $region17: #{tpu_custom_call.1} parent=15 // pred_check
          %p220 = pneg %p57
        $region18: #{tpu_custom_call.1} parent=15 // pred_check_branch
          %222 = sbr.rel (%p220) target = $region20
        $region19: #{tpu_custom_call.1} parent=15 // pred_region
          %s223 = sand.u32 %s47, 1
          %s224 = scalar_lea.sflag [#allocation4], %s223
          %s225 = sand.u32 %s47, 1
          %s226 = smul.addr %s225, 8
          %s227 = scalar_lea.vmem [#allocation3], %s226
          %s228 = sadd.s32 %s30, %s31
          %s230 = ssub.s32 128, 128
          %231 = vsyncadd %s224, %s230
          %s232 = smul.addr %s228, 128
          %s233 = scalar_lea.hbm %s0, %s232
          %s235 = sshll.u32 %s227, 4
          %s236 = int_to_ptr.vmem [resolvable:$true] %s235
          %238 = dma.hbm_to_vmem [thread:$0]  %s233, 128, %s236, %s224
        $region20: #{tpu_custom_call.1} parent=15 // pred_fallthru
          _
        // Predicated region
        $region21: #{tpu_custom_call.1} parent=15 // pred_check
          %p239 = pneg %p85
        $region22: #{tpu_custom_call.1} parent=15 // pred_check_branch
          %241 = sbr.rel (%p239) target = $region24
        $region23: #{tpu_custom_call.1} parent=15 // pred_region
          %s242 = sand.u32 %s23, 1
          %s243 = scalar_lea.sflag [#allocation7], %s242
          %s244 = sand.u32 %s75, 1
          %s245 = smul.addr %s244, 8
          %s246 = scalar_lea.vmem [#allocation6], %s245
          %s247 = sadd.s32 %s30, %s31
          %s249 = ssub.s32 128, 128
          %250 = vsyncadd %s243, %s249
          %s251 = smul.addr %s247, 128
          %s252 = scalar_lea.hbm %s1, %s251
          %s254 = sshll.u32 %s246, 4
          %s255 = int_to_ptr.vmem [resolvable:$true] %s254
          %257 = dma.hbm_to_vmem [thread:$0]  %s252, 128, %s255, %s243
        $region24: #{tpu_custom_call.1} parent=15 // pred_fallthru
          _
        // Predicated region
        $region25: #{tpu_custom_call.1} parent=15 // pred_check
          %p258 = pneg %p113
        $region26: #{tpu_custom_call.1} parent=15 // pred_check_branch
          %260 = sbr.rel (%p258) target = $region28
        $region27: #{tpu_custom_call.1} parent=15 // pred_region
          %s261 = sand.u32 %s23, 1
          %s262 = scalar_lea.sflag [#allocation7], %s261
          %s263 = sand.u32 %s103, 1
          %s264 = smul.addr %s263, 8
          %s265 = scalar_lea.vmem [#allocation8], %s264
          %s266 = sadd.s32 %s30, %s31
          %s268 = ssub.s32 128, 128
          %269 = vsyncadd %s262, %s268
          %s270 = smul.addr %s266, 128
          %s271 = scalar_lea.hbm %s2, %s270
          %s273 = sshll.u32 %s265, 4
          %s274 = int_to_ptr.vmem [resolvable:$true] %s273
          %276 = dma.hbm_to_vmem [thread:$0]  %s271, 128, %s274, %s262
        $region28: #{tpu_custom_call.1} parent=15 // pred_fallthru
          _
        // Predicated region
        $region29: #{tpu_custom_call.1} parent=15 // pred_check
          %p277 = pneg %p141
        $region30: #{tpu_custom_call.1} parent=15 // pred_check_branch
          %279 = sbr.rel (%p277) target = $region32
        $region31: #{tpu_custom_call.1} parent=15 // pred_region
          %s280 = sand.u32 %s23, 1
          %s281 = scalar_lea.sflag [#allocation10], %s280
          %s282 = sand.u32 %s131, 1
          %s283 = smul.addr %s282, 8
          %s284 = scalar_lea.vmem [#allocation9], %s283
          %s285 = sadd.s32 %s30, %s31
          %s287 = ssub.s32 128, 128
          %288 = vsyncadd %s281, %s287
          %s289 = smul.addr %s285, 128
          %s290 = scalar_lea.hbm %s3, %s289
          %s292 = sshll.u32 %s284, 4
          %s293 = int_to_ptr.vmem [resolvable:$true] %s292
          %295 = dma.hbm_to_vmem [thread:$0]  %s290, 128, %s293, %s281
        $region32: #{tpu_custom_call.1} parent=15 // pred_fallthru
          _
        // Predicated region
        $region33: #{tpu_custom_call.1} parent=15 // pred_check
          %p296 = pneg %p169
        $region34: #{tpu_custom_call.1} parent=15 // pred_check_branch
          %298 = sbr.rel (%p296) target = $region36
        $region35: #{tpu_custom_call.1} parent=15 // pred_region
          %s299 = sand.u32 %s23, 1
          %s300 = scalar_lea.sflag [#allocation10], %s299
          %s301 = sand.u32 %s159, 1
          %s302 = smul.addr %s301, 8
          %s303 = scalar_lea.vmem [#allocation11], %s302
          %s304 = sadd.s32 %s30, %s31
          %s306 = ssub.s32 128, 128
          %307 = vsyncadd %s300, %s306
          %s308 = smul.addr %s304, 128
          %s309 = scalar_lea.hbm %s4, %s308
          %s311 = sshll.u32 %s303, 4
          %s312 = int_to_ptr.vmem [resolvable:$true] %s311
          %314 = dma.hbm_to_vmem [thread:$0]  %s309, 128, %s312, %s300
        $region36: #{tpu_custom_call.1} parent=15 // pred_fallthru
          _
      $region16: #{tpu_custom_call.1} parent=5 // pred_fallthru
        _
      %p315 = scmp.le.s32.totalorder 1, %s23
      %p316 = scmp.lt.s32.totalorder %s23, 3
      %p317 = pnand %p315, %p316
      %p318 = pneg %p317
      // Predicated region
      $region37: #{tpu_custom_call.1} parent=5 // pred_check
        _
      $region38: #{tpu_custom_call.1} parent=5 // pred_check_branch
        %320 = sbr.rel (%p317) target = $region40
      $region39: #{tpu_custom_call.1} parent=5 // pred_region
        %s321 = ssub.s32 %s23, 1
        %s322 = sand.u32 %s50, 1
        %s323 = scalar_lea.sflag [#allocation4], %s322
        %s324 = sand.u32 %s50, 1
        %s325 = smul.addr %s324, 8
        %s326 = scalar_lea.vmem [#allocation3], %s325
        // Predicated region
        $region41: #{tpu_custom_call.1} parent=39 // pred_check
          %p327 = pneg %p63
        $region42: #{tpu_custom_call.1} parent=39 // pred_check_branch
          %329 = sbr.rel (%p327) target = $region44
        $region43: #{tpu_custom_call.1} parent=39 // pred_region
          %330 = dma.done %s323, 128
        $region44: #{tpu_custom_call.1} parent=39 // pred_fallthru
          _
        %s331 = sand.u32 %s28, 1
        %s332 = scalar_lea.sflag [#allocation7], %s331
        %s333 = sand.u32 %s78, 1
        %s334 = smul.addr %s333, 8
        %s335 = scalar_lea.vmem [#allocation6], %s334
        // Predicated region
        $region45: #{tpu_custom_call.1} parent=39 // pred_check
          %p336 = pneg %p91
        $region46: #{tpu_custom_call.1} parent=39 // pred_check_branch
          %338 = sbr.rel (%p336) target = $region48
        $region47: #{tpu_custom_call.1} parent=39 // pred_region
          %339 = dma.done %s332, 128
        $region48: #{tpu_custom_call.1} parent=39 // pred_fallthru
          _
        %s340 = sand.u32 %s28, 1
        %s341 = scalar_lea.sflag [#allocation7], %s340
        %s342 = sand.u32 %s106, 1
        %s343 = smul.addr %s342, 8
        %s344 = scalar_lea.vmem [#allocation8], %s343
        // Predicated region
        $region49: #{tpu_custom_call.1} parent=39 // pred_check
          %p345 = pneg %p119
        $region50: #{tpu_custom_call.1} parent=39 // pred_check_branch
          %347 = sbr.rel (%p345) target = $region52
        $region51: #{tpu_custom_call.1} parent=39 // pred_region
          %348 = dma.done %s341, 128
        $region52: #{tpu_custom_call.1} parent=39 // pred_fallthru
          _
        %s349 = sand.u32 %s28, 1
        %s350 = scalar_lea.sflag [#allocation10], %s349
        %s351 = sand.u32 %s134, 1
        %s352 = smul.addr %s351, 8
        %s353 = scalar_lea.vmem [#allocation9], %s352
        // Predicated region
        $region53: #{tpu_custom_call.1} parent=39 // pred_check
          %p354 = pneg %p147
        $region54: #{tpu_custom_call.1} parent=39 // pred_check_branch
          %356 = sbr.rel (%p354) target = $region56
        $region55: #{tpu_custom_call.1} parent=39 // pred_region
          %357 = dma.done %s350, 128
        $region56: #{tpu_custom_call.1} parent=39 // pred_fallthru
          _
        %s358 = sand.u32 %s28, 1
        %s359 = scalar_lea.sflag [#allocation10], %s358
        %s360 = sand.u32 %s162, 1
        %s361 = smul.addr %s360, 8
        %s362 = scalar_lea.vmem [#allocation11], %s361
        // Predicated region
        $region57: #{tpu_custom_call.1} parent=39 // pred_check
          %p363 = pneg %p175
        $region58: #{tpu_custom_call.1} parent=39 // pred_check_branch
          %365 = sbr.rel (%p363) target = $region60
        $region59: #{tpu_custom_call.1} parent=39 // pred_region
          %366 = dma.done %s359, 128
        $region60: #{tpu_custom_call.1} parent=39 // pred_fallthru
          _
        %s367 = sand.u32 %s50, 1
        %s368 = scalar_lea.sflag [#allocation4], %s367
        %s369 = sand.u32 %s50, 1
        %s370 = smul.addr %s369, 8
        %s371 = scalar_lea.vmem [#allocation3], %s370
        %p372 = pneg %p63
        %p373 = pneg %p60
        %s374 = sand.u32 %s28, 1
        %s375 = scalar_lea.sflag [#allocation7], %s374
        %s376 = sand.u32 %s78, 1
        %s377 = smul.addr %s376, 8
        %s378 = scalar_lea.vmem [#allocation6], %s377
        %p379 = pneg %p91
        %p380 = pneg %p88
        %s381 = sand.u32 %s28, 1
        %s382 = scalar_lea.sflag [#allocation7], %s381
        %s383 = sand.u32 %s106, 1
        %s384 = smul.addr %s383, 8
        %s385 = scalar_lea.vmem [#allocation8], %s384
        %p386 = pneg %p119
        %p387 = pneg %p116
        %s388 = sand.u32 %s28, 1
        %s389 = scalar_lea.sflag [#allocation10], %s388
        %s390 = sand.u32 %s134, 1
        %s391 = smul.addr %s390, 8
        %s392 = scalar_lea.vmem [#allocation9], %s391
        %p393 = pneg %p147
        %p394 = pneg %p144
        %s395 = sand.u32 %s28, 1
        %s396 = scalar_lea.sflag [#allocation10], %s395
        %s397 = sand.u32 %s162, 1
        %s398 = smul.addr %s397, 8
        %s399 = scalar_lea.vmem [#allocation11], %s398
        %p400 = pneg %p175
        %p401 = pneg %p172
        %p402 = pneg %p201
        %p403 = pneg %p198
        %s404 = sand.u32 %s188, 1
        %s405 = scalar_lea.sflag [#allocation5], %s404
        %s406 = sand.u32 %s188, 1
        %s407 = smul.addr %s406, 8
        %s408 = scalar_lea.vmem [#allocation12], %s407
        %s409 = sadd.s32 %s32, %s33
        %s410 = sadd.s32 %s32, %s33
        %s411 = sadd.s32 %s32, %s33
        %s412 = sadd.s32 %s32, %s33
        %s413 = sadd.s32 %s32, %s33
        %p414 = scmp.eq.s32.totalorder %s33, 0
        // Predicated region
        $region61: #{tpu_custom_call.1} parent=39 // pred_check
          %p415 = pneg %p414
        $region62: #{tpu_custom_call.1} parent=39 // pred_check_branch
          %417 = sbr.rel (%p415) target = $region64
        $region63: #{tpu_custom_call.1} parent=39 // pred_region
          %418 = vst [vmem:[#allocation2] sm:$0x1] 0.0
        $region64: #{tpu_custom_call.1} parent=39 // pred_fallthru
          _
        %v419 = vld [vmem:[%s326] sm:$0xff]
        %v420 = vld [vmem:[%s335] sm:$0xff]
        %v421 = vld [vmem:[%s344] sm:$0xff]
        %v422 = vld [vmem:[%s353] sm:$0xff]
        %v423 = vld [vmem:[%s362] sm:$0xff]
        %v424 = vsub.f32 %v421, %v420
        %v425 = vmax.f32 %v424, 0.0
        %v426 = vsub.f32 %v419, %v421
        %v427 = vmax.f32 %v426, 0.0
        %v428 = vadd.f32 %v425, %v427
        %v429 = vsub.f32 %v419, %v420
        %v430 = vmax.f32 %v429, 0.0
        %v431 = vadd.f32 %v419, %v420
        %v432 = vmul.f32 %v431, 0.5
        %v433 = vsub.f32 %v432, %v422
        %v434 = vmul.f32 %v423, %v433
        %v435 = vmax.f32 %v434, 0.0
        %v436 = vmul.f32 %v428, 0.1
        %v437 = vmul.f32 %v430, 10.0
        %v438 = vadd.f32 %v436, %v437
        %v439 = vmul.f32 %v435, 0.5
        %v440 = vadd.f32 %v438, %v439
        %v441 = vld [vmem:[#allocation2] sm:$0x1]
        %v442 = vrot.slane %v440, 4
        %v443 = vadd.f32 %v440, %v442
        %v444 = vrot.slane %v443, 2
        %v445 = vadd.f32 %v443, %v444
        %v446 = vrot.slane %v445, 1
        %v447 = vadd.f32 %v445, %v446
        %v448 = vadd.f32 %v441, %v447
        %449 = vst [vmem:[#allocation2] sm:$0x1] %v448
        // Predicated region
        $region65: #{tpu_custom_call.1} parent=39 // pred_check
          %p450 = pneg %p414
        $region66: #{tpu_custom_call.1} parent=39 // pred_check_branch
          %452 = sbr.rel (%p450) target = $region68
        $region67: #{tpu_custom_call.1} parent=39 // pred_region
          %v453 = vld [vmem:[#allocation2] sm:$0x1]
          %vm454 = vcmask 1040384
          %v455 = vsel %vm454, %v453, 0.0
          %456 = vadd.xlane.f32.xlu0 %v455
          %v457 = vpop.xlane.xlu0 %456
          %v458 = vrot.slane %v457, 4
          %v459 = vadd.f32 %v457, %v458
          %v460 = vrot.slane %v459, 2
          %v461 = vadd.f32 %v459, %v460
          %v462 = vrot.slane %v461, 1
          %v463 = vadd.f32 %v461, %v462
          %s464 = vtos %v463
          %s465 = smul.f32 %s464, 0.125
          %v466 = vstv %s465
          %467 = vst [vmem:[%s408] sm:$0xff] %v466
        $region68: #{tpu_custom_call.1} parent=39 // pred_fallthru
          _
        %s468 = sand.u32 %s188, 1
        %s469 = scalar_lea.sflag [#allocation5], %s468
        %s470 = sand.u32 %s188, 1
        %s471 = smul.addr %s470, 8
        %s472 = scalar_lea.vmem [#allocation12], %s471
        // Predicated region
        $region69: #{tpu_custom_call.1} parent=39 // pred_check
          %p473 = pneg %p198
        $region70: #{tpu_custom_call.1} parent=39 // pred_check_branch
          %475 = sbr.rel (%p473) target = $region72
        $region71: #{tpu_custom_call.1} parent=39 // pred_region
          %s477 = ssub.s32 128, 128
          %478 = vsyncadd %s469, %s477
          %s479 = smul.addr %s32, 128
          %s480 = scalar_lea.hbm %s5, %s479
          %s482 = sshll.u32 %s472, 4
          %s483 = int_to_ptr.vmem [resolvable:$true] %s482
          %485 = dma.vmem_to_hbm [thread:$0]  %s483, 128, %s480, %s469
        $region72: #{tpu_custom_call.1} parent=39 // pred_fallthru
          _
      $region40: #{tpu_custom_call.1} parent=5 // pred_fallthru
        _
      %p486 = scmp.le.s32.totalorder 2, %s23
      // Predicated region
      $region73: #{tpu_custom_call.1} parent=5 // pred_check
        %p487 = pneg %p486
      $region74: #{tpu_custom_call.1} parent=5 // pred_check_branch
        %489 = sbr.rel (%p487) target = $region76
      $region75: #{tpu_custom_call.1} parent=5 // pred_region
        %s490 = ssub.s32 %s23, 2
        // Predicated region
        $region77: #{tpu_custom_call.1} parent=75 // pred_check
          %p491 = pneg %p204
        $region78: #{tpu_custom_call.1} parent=75 // pred_check_branch
          %493 = sbr.rel (%p491) target = $region80
        $region79: #{tpu_custom_call.1} parent=75 // pred_region
          %s494 = sand.u32 %s189, 1
          %s495 = scalar_lea.sflag [#allocation5], %s494
          %s496 = sand.u32 %s189, 1
          %s497 = smul.addr %s496, 8
          %s498 = scalar_lea.vmem [#allocation12], %s497
          %499 = dma.done %s495, 128
        $region80: #{tpu_custom_call.1} parent=75 // pred_fallthru
          _
      $region76: #{tpu_custom_call.1} parent=5 // pred_fallthru
        _
    $region6: #{tpu_custom_call.1} parent=1 // loop_footer
      %s27 = sadd.s32 1, %s23
    $region7: #{tpu_custom_call.1} parent=1 // loop_footer_branch
      %22 = sbr.rel target = $region3
    $region8: #{tpu_custom_call.1} parent=1 // loop_exit
      _
    %500 = vsyncpa [#allocation4], 1
    %s501 = scalar_lea.sflag [#allocation4], 1
    %502 = vsyncpa %s501, 1
    %503 = vsyncpa [#allocation7], 1
    %s504 = scalar_lea.sflag [#allocation7], 1
    %505 = vsyncpa %s504, 1
    %506 = vsyncpa [#allocation10], 1
    %s507 = scalar_lea.sflag [#allocation10], 1
    %508 = vsyncpa %s507, 1
    %509 = vsyncpa [#allocation5], 1
    %s510 = scalar_lea.sflag [#allocation5], 1
    %511 = vsyncpa %s510, 1

</llo_original>
